<compile_context>
chip_gen: v6e
topology: v6e:2x2x1
jax: 0.10.0
libtpu: 0.0.40
codegen_flags: <defaults>
</compile_context>

<pallas_src>
import math

import jax
import jax.numpy as jnp
from jax.experimental import pallas as pl
from jax.experimental.pallas import tpu as pltpu


# --------------------------------------------------------------------------- #
# helpers
# --------------------------------------------------------------------------- #

def _round_up(v: int, m: int) -> int:
    return (v + m - 1) // m * m


def _vmem_tile_bytes(rows: int, cols: int, itemsize: int) -> int:
    """Conservative VMEM footprint of a (rows, cols) buffer in tiled layout."""
    sublane = 32 // itemsize          # f32 -> 8 rows/tile, bf16 -> 16
    return _round_up(max(rows, 1), sublane) * _round_up(max(cols, 1), 128) * itemsize


def _vmem_budget_and_limit():
    """Per-generation VMEM planning budget and scoped compiler limit."""
    try:
        cap = int(pltpu.get_tpu_info().vmem_capacity_bytes)
    except Exception:
        cap = 0
    if cap <= 0:
        cap = 64 << 20                # conservative fallback: v7x per-TC VMEM
    return int(cap * 0.70), int(cap * 0.85)


# --------------------------------------------------------------------------- #
# kernels
# --------------------------------------------------------------------------- #

def _make_resident_kernel(d_in: int, mm_dtype):
    """Weights fully resident in VMEM; rows streamed over a 1-D grid."""
    inv_d_in = 1.0 / float(d_in)

    def kernel(x_ref, w_in_ref, b_in_ref, w_out_ref, b_out_ref, o_ref):
        x = x_ref[...]                                        # (tn, d_in) mm_dtype
        xf = x.astype(jnp.float32)
        # Fused normalization exponent: exp(z)/sqrt(exp((4+4||x||^2)/(2 d_in)))
        #                            == exp(z - (1+||x||^2)/d_in)
        shift = (1.0 + jnp.sum(xf * xf, axis=1, keepdims=True)) * inv_d_in

        z = jnp.dot(x, w_in_ref[...], preferred_element_type=jnp.float32)
        z = z + b_in_ref[...]
        ez = jnp.exp(z - shift)                               # single EUP pass

        out = jnp.dot(ez.astype(mm_dtype), w_out_ref[...],
                      preferred_element_type=jnp.float32)
        o_ref[...] = (out + b_out_ref[...]).astype(o_ref.dtype)

    return kernel


def _make_width_tiled_kernel(d_in: int, mm_dtype):
    """Fallback: hidden width streamed in chunks, f32 accumulator scratch."""
    inv_d_in = 1.0 / float(d_in)

    def kernel(x_ref, w_in_ref, b_in_ref, w_out_ref, b_out_ref, o_ref, acc_ref):
        j = pl.program_id(1)

        @pl.when(j == 0)
        def _():
            acc_ref[...] = jnp.zeros_like(acc_ref)

        x = x_ref[...]                                        # reused across j
        xf = x.astype(jnp.float32)
        shift = (1.0 + jnp.sum(xf * xf, axis=1, keepdims=True)) * inv_d_in

        z = jnp.dot(x, w_in_ref[...], preferred_element_type=jnp.float32)
        z = z + b_in_ref[...]
        ez = jnp.exp(z - shift)

        acc_ref[...] += jnp.dot(ez.astype(mm_dtype), w_out_ref[...],
                                preferred_element_type=jnp.float32)

        @pl.when(j == pl.num_programs(1) - 1)
        def _():
            o_ref[...] = (acc_ref[...] + b_out_ref[...]).astype(o_ref.dtype)

    return kernel


# --------------------------------------------------------------------------- #
# parameter preparation (hoisted out of the per-call path)
# --------------------------------------------------------------------------- #

def prepare_gaussnet_params(w_in, b_in, w_out, b_out, *, matmul_dtype=jnp.bfloat16):
    """One-time cast (and zero-pad of the hidden width to a 128 multiple).

    w_in: (d_in, width), w_out: (width, d_out)  — i.e. nn.Linear weight.T.
    Zero width-padding is exact: padded z columns are 0, and the matching
    zero rows of W_out contribute nothing to the output.
    """
    d_in, width = w_in.shape
    w2, d_out = w_out.shape
    assert w2 == width and b_in.shape == (width,) and b_out.shape == (d_out,)
    mm = jnp.dtype(matmul_dtype)

    width_p = _round_up(width, 128)
    if width_p == width:
        w_in_p = w_in.astype(mm)
        b_in_p = b_in.reshape(1, width).astype(jnp.float32)
        w_out_p = w_out.astype(mm)
    else:
        w_in_p = jnp.zeros((d_in, width_p), mm).at[:, :width].set(w_in.astype(mm))
        b_in_p = jnp.zeros((1, width_p), jnp.float32).at[:, :width].set(
            b_in.reshape(1, width).astype(jnp.float32))
        w_out_p = jnp.zeros((width_p, d_out), mm).at[:width, :].set(w_out.astype(mm))
    b_out_p = b_out.reshape(1, d_out).astype(jnp.float32)

    return dict(w_in=w_in_p, b_in=b_in_p, w_out=w_out_p, b_out=b_out_p,
                d_in=d_in, width=width, width_p=width_p, d_out=d_out,
                matmul_dtype=mm)


# --------------------------------------------------------------------------- #
# forward
# --------------------------------------------------------------------------- #

def gaussnet_forward(x, params, *, tile_n=None, vmem_budget_bytes=None,
                     vmem_limit_bytes=None, force_width_tiled=False):
    """Fused GaussNet forward.  x: (N, d_in) f32.  Returns (N, d_out) f32."""
    d_in = params["d_in"]
    width_p = params["width_p"]
    d_out = params["d_out"]
    mm = params["matmul_dtype"]
    mm_bytes = mm.itemsize

    N = x.shape[0]
    assert x.shape[1] == d_in, "x feature dim mismatch"

    # Stream x in the MXU operand dtype (halves x HBM bytes for bf16).
    # Identity (no HBM copy) when x already has that dtype (f32-exact path).
    xq = x if x.dtype == mm else x.astype(mm)

    default_budget, default_limit = _vmem_budget_and_limit()
    budget = vmem_budget_bytes if vmem_budget_bytes is not None else default_budget
    limit = vmem_limit_bytes if vmem_limit_bytes is not None else default_limit

    # ---- VMEM accounting: every pipelined input/output is double-buffered. ----
    def resident_fp(tn):
        return (2 * _vmem_tile_bytes(tn, d_in, mm_bytes)                 # x tiles
                + 2 * _vmem_tile_bytes(tn, d_out, 4)                     # out tiles
                + 2 * (_vmem_tile_bytes(d_in, width_p, mm_bytes)
                       + _vmem_tile_bytes(width_p, d_out, mm_bytes))     # weights x2
                + 2 * (_vmem_tile_bytes(1, width_p, 4)
                       + _vmem_tile_bytes(1, d_out, 4))                  # biases x2
                + 2 * _vmem_tile_bytes(tn, width_p, 4))                  # z / ez temps

    def tiled_fp(tn, tw):
        return (2 * _vmem_tile_bytes(tn, d_in, mm_bytes)
                + 2 * _vmem_tile_bytes(tn, d_out, 4)
                + 2 * (_vmem_tile_bytes(d_in, tw, mm_bytes)
                       + _vmem_tile_bytes(tw, d_out, mm_bytes))
                + 2 * (_vmem_tile_bytes(1, tw, 4)
                       + _vmem_tile_bytes(1, d_out, 4))
                + _vmem_tile_bytes(tn, d_out, 4)                         # f32 acc
                + 2 * _vmem_tile_bytes(tn, tw, 4))

    n_cap = _round_up(max(N, 8), 8)

    def pick_tile_n(fp_fn):
        if tile_n is not None:
            return max(8, _round_up(min(tile_n, n_cap), 8))
        t = min(2048, n_cap)
        if t >= 16:
            t = _round_up(t, 16)                    # bf16 sublane packing
        # Shrink in MXU-friendly 256-row steps first, then halve as a last resort.
        while t > 256 and fp_fn(t) > budget:
            t -= 256
        while t > 16 and fp_fn(t) > budget:
            t = max(16, _round_up(t // 2, 8))
        return t

    resident_weight_bytes = 2 * (_vmem_tile_bytes(d_in, width_p, mm_bytes)
                                 + _vmem_tile_bytes(width_p, d_out, mm_bytes))
    use_width_tiling = force_width_tiled or resident_weight_bytes > int(0.6 * budget)

    cost = pl.CostEstimate(
        flops=2 * N * width_p * (d_in + d_out),
        transcendentals=N * width_p,
        bytes_accessed=(N * d_in * mm_bytes + N * d_out * 4
                        + (d_in * width_p + width_p * d_out) * mm_bytes
                        + (width_p + d_out) * 4))

    w_in_p, b_in_p = params["w_in"], params["b_in"]
    w_out_p, b_out_p = params["w_out"], params["b_out"]

    if not use_width_tiling:
        tn = pick_tile_n(resident_fp)
        grid = (pl.cdiv(N, tn),)                      # ragged last tile is masked
        return pl.pallas_call(
            _make_resident_kernel(d_in, mm),
            out_shape=jax.ShapeDtypeStruct((N, d_out), jnp.float32),   # unpadded out
            grid=grid,
            in_specs=[
                pl.BlockSpec((tn, d_in), lambda i: (i, 0)),            # streamed x
                pl.BlockSpec((d_in, width_p), lambda i: (0, 0)),       # resident W_in
                pl.BlockSpec((1, width_p), lambda i: (0, 0)),          # resident b_in
                pl.BlockSpec((width_p, d_out), lambda i: (0, 0)),      # resident W_out
                pl.BlockSpec((1, d_out), lambda i: (0, 0)),            # resident b_out
            ],
            out_specs=pl.BlockSpec((tn, d_out), lambda i: (i, 0)),
            compiler_params=pltpu.CompilerParams(
                dimension_semantics=("parallel",),                     # megacore-shardable
                vmem_limit_bytes=limit),
            cost_estimate=cost,
        )(xq, w_in_p, b_in_p, w_out_p, b_out_p)

    # ---- width-tiled fallback (large hidden widths / v7x 64 MiB VMEM) ---- #
    tw = 256 if width_p % 256 == 0 else 128
    tn = pick_tile_n(lambda t: tiled_fp(t, tw))
    if tw > 128 and tiled_fp(tn, tw) > budget:
        tw = 128
        tn = pick_tile_n(lambda t: tiled_fp(t, tw))
    grid = (pl.cdiv(N, tn), width_p // tw)
    return pl.pallas_call(
        _make_width_tiled_kernel(d_in, mm),
        out_shape=jax.ShapeDtypeStruct((N, d_out), jnp.float32),
        grid=grid,
        in_specs=[
            pl.BlockSpec((tn, d_in), lambda i, j: (i, 0)),             # x reused over j
            pl.BlockSpec((d_in, tw), lambda i, j: (0, j)),             # W_in chunk
            pl.BlockSpec((1, tw), lambda i, j: (0, j)),                # b_in chunk
            pl.BlockSpec((tw, d_out), lambda i, j: (j, 0)),            # W_out chunk
            pl.BlockSpec((1, d_out), lambda i, j: (0, 0)),             # b_out
        ],
        out_specs=pl.BlockSpec((tn, d_out), lambda i, j: (i, 0)),
        scratch_shapes=[pltpu.VMEM((tn, d_out), jnp.float32)],
        compiler_params=pltpu.CompilerParams(
            dimension_semantics=("parallel", "arbitrary"),
            vmem_limit_bytes=limit),
        cost_estimate=cost,
    )(xq, w_in_p, b_in_p, w_out_p, b_out_p)


# --------------------------------------------------------------------------- #
# pure-JAX references for testing
# --------------------------------------------------------------------------- #

def gaussnet_reference(x, w_in, b_in, w_out, b_out, d_in):
    """Exact f32 mirror of the PyTorch forward."""
    z = x @ w_in + b_in
    ez = jnp.exp(z)
    norm = jnp.exp((4.0 + 4.0 * jnp.sum(x * x, axis=1)) / (2.0 * d_in))
    norm = jnp.sqrt(norm)[:, None]
    return (ez / norm) @ w_out + b_out


def gaussnet_reference_mm(x, w_in, b_in, w_out, b_out, d_in, mm_dtype):
    """Reference with the kernel's exact mixed-precision math (mm-dtype operands,
    f32 accumulation, ||x||^2 from the mm-rounded x)."""
    xq = x.astype(mm_dtype)
    xf = xq.astype(jnp.float32)
    shift = (1.0 + jnp.sum(xf * xf, axis=1, keepdims=True)) / d_in
    z = jnp.dot(xq, w_in.astype(mm_dtype),
                preferred_element_type=jnp.float32) + b_in
    ez = jnp.exp(z - shift)
    return jnp.dot(ez.astype(mm_dtype), w_out.astype(mm_dtype),
                   preferred_element_type=jnp.float32) + b_out


# --------------------------------------------------------------------------- #
# self-test
# --------------------------------------------------------------------------- #

if __name__ == "__main__":
    def make_inputs(key, N, d_in, width, d_out):
        # Matches the module's init: weight ~ N(mw, sw/sqrt(in)), bias ~ N(mb, sb).
        mw, sw, mb, sb = 0.0, 1.0, 0.0, 1.0
        kx, kwi, kbi, kwo, kbo = jax.random.split(key, 5)
        w_in = mw + (sw / math.sqrt(d_in)) * jax.random.normal(
            kwi, (d_in, width), dtype=jnp.float32)
        b_in = mb + sb * jax.random.normal(kbi, (width,), dtype=jnp.float32)
        w_out = mw + (sw / math.sqrt(width)) * jax.random.normal(
            kwo, (width, d_out), dtype=jnp.float32)
        b_out = mb + sb * jax.random.normal(kbo, (d_out,), dtype=jnp.float32)
        x = jax.random.normal(kx, (N, d_in), dtype=jnp.float32)
        return x, w_in, b_in, w_out, b_out

    key = jax.random.PRNGKey(0)
    k1, k2, k3 = jax.random.split(key, 3)

    # Case 1: small shapes, f32 MXU path -> exact-semantics check vs f32 ref.
    N, d_in, width, d_out = 8, 32, 64, 16
    x, w_in, b_in, w_out, b_out = make_inputs(k1, N, d_in, width, d_out)
    p32 = prepare_gaussnet_params(w_in, b_in, w_out, b_out, matmul_dtype=jnp.float32)
    out = jax.block_until_ready(gaussnet_forward(x, p32))
    assert out.shape == (N, d_out)
    ref = gaussnet_reference(x, w_in, b_in, w_out, b_out, d_in)
    assert jnp.allclose(out, ref, rtol=1e-4, atol=1e-4), "f32 path mismatch"

    # Case 2: bf16-streamed x + bf16 MXU path (default perf config).
    pbf = prepare_gaussnet_params(w_in, b_in, w_out, b_out, matmul_dtype=jnp.bfloat16)
    out_bf = jax.block_until_ready(gaussnet_forward(x, pbf))
    ref_bf = gaussnet_reference_mm(x, w_in, b_in, w_out, b_out, d_in, jnp.bfloat16)
    assert jnp.allclose(out_bf, ref_bf, rtol=1e-4, atol=1e-3), "bf16 path mismatch"
    assert jnp.allclose(out_bf, ref, rtol=5e-2, atol=2e-1), "bf16 vs f32 drift"

    # Case 3: ragged N / unaligned features, multi-row-tile grid, no pad copies.
    N2, d_in2, width2, d_out2 = 300, 20, 50, 10
    x2, w_in2, b_in2, w_out2, b_out2 = make_inputs(k2, N2, d_in2, width2, d_out2)
    p2 = prepare_gaussnet_params(w_in2, b_in2, w_out2, b_out2, matmul_dtype=jnp.bfloat16)
    out2 = jax.block_until_ready(gaussnet_forward(x2, p2, tile_n=128))
    assert out2.shape == (N2, d_out2)
    ref2 = gaussnet_reference_mm(x2, w_in2, b_in2, w_out2, b_out2, d_in2, jnp.bfloat16)
    assert jnp.allclose(out2, ref2, rtol=1e-4, atol=1e-3), "tiled-rows bf16 mismatch"

    # Case 4: width-tiled fallback path (v7x large-width strategy), forced.
    N3, d_in3, width3, d_out3 = 64, 32, 300, 16
    x3, w_in3, b_in3, w_out3, b_out3 = make_inputs(k3, N3, d_in3, width3, d_out3)
    p3 = prepare_gaussnet_params(w_in3, b_in3, w_out3, b_out3, matmul_dtype=jnp.bfloat16)
    out3 = jax.block_until_ready(gaussnet_forward(x3, p3, force_width_tiled=True))
    assert out3.shape == (N3, d_out3)
    ref3 = gaussnet_reference_mm(x3, w_in3, b_in3, w_out3, b_out3, d_in3, jnp.bfloat16)
    assert jnp.allclose(out3, ref3, rtol=1e-4, atol=1e-3), "width-tiled mismatch"

    print("KERNEL_OK")
</pallas_src>

<mosaic_0001>
module attributes {stable_mosaic.version = 11 : i64} {
  func.func @kernel(%arg0: i32, %arg1: memref<8x32xf32, #tpu.memory_space<vmem>>, %arg2: memref<32x128xf32, #tpu.memory_space<vmem>>, %arg3: memref<1x128xf32, #tpu.memory_space<vmem>>, %arg4: memref<128x16xf32, #tpu.memory_space<vmem>>, %arg5: memref<1x16xf32, #tpu.memory_space<vmem>>, %arg6: memref<8x16xf32, #tpu.memory_space<vmem>>) attributes {dimension_semantics = [#tpu.dimension_semantics<parallel>], iteration_bounds = array<i64: 1>, scalar_prefetch = 0 : i64, scratch_operands = 0 : i64, tpu.core_type = #tpu.core_type<tc>, window_params = [{transform_indices = @transform_0, window_bounds = array<i64: 8, 32>}, {pipeline_mode = #tpu.pipeline_mode<synchronous>, transform_indices = @transform_1, window_bounds = array<i64: 32, 128>}, {pipeline_mode = #tpu.pipeline_mode<synchronous>, transform_indices = @transform_2, window_bounds = array<i64: 1, 128>}, {pipeline_mode = #tpu.pipeline_mode<synchronous>, transform_indices = @transform_3, window_bounds = array<i64: 128, 16>}, {pipeline_mode = #tpu.pipeline_mode<synchronous>, transform_indices = @transform_4, window_bounds = array<i64: 1, 16>}, {transform_indices = @transform_5, window_bounds = array<i64: 8, 16>}]} {
    %c0 = arith.constant 0 : index
    %c0_0 = arith.constant 0 : index
    %0 = vector.load %arg1[%c0, %c0_0] : memref<8x32xf32, #tpu.memory_space<vmem>>, vector<8x32xf32>
    %1 = arith.mulf %0, %0 : vector<8x32xf32>
    %cst = arith.constant dense<0.000000e+00> : vector<8xf32>
    %2 = vector.multi_reduction <add>, %1, %cst [1] : vector<8x32xf32> to vector<8xf32>
    %3 = vector.shape_cast %2 : vector<8xf32> to vector<8x1xf32>
    %cst_1 = arith.constant 1.000000e+00 : f32
    %4 = vector.broadcast %cst_1 : f32 to vector<8x1xf32>
    %5 = arith.addf %4, %3 : vector<8x1xf32>
    %cst_2 = arith.constant 3.125000e-02 : f32
    %6 = vector.broadcast %cst_2 : f32 to vector<8x1xf32>
    %7 = arith.mulf %5, %6 : vector<8x1xf32>
    %c0_3 = arith.constant 0 : index
    %c0_4 = arith.constant 0 : index
    %8 = vector.load %arg2[%c0_3, %c0_4] : memref<32x128xf32, #tpu.memory_space<vmem>>, vector<32x128xf32>
    %cst_5 = arith.constant dense<0.000000e+00> : vector<8x128xf32>
    %9 = tpu.matmul %0, %8, %cst_5 {dimension_numbers = #tpu.dot_dimension_numbers<[1], [0], [0], [1], [0, 0, 1, 1], [], []>} : vector<8x32xf32>, vector<32x128xf32>, vector<8x128xf32> -> vector<8x128xf32>
    %c0_6 = arith.constant 0 : index
    %c0_7 = arith.constant 0 : index
    %10 = vector.load %arg3[%c0_6, %c0_7] : memref<1x128xf32, #tpu.memory_space<vmem>>, vector<1x128xf32>
    %11 = vector.broadcast %10 : vector<1x128xf32> to vector<8x128xf32>
    %12 = arith.addf %9, %11 : vector<8x128xf32>
    %13 = vector.broadcast %7 : vector<8x1xf32> to vector<8x128xf32>
    %14 = arith.subf %12, %13 : vector<8x128xf32>
    %15 = math.exp %14 : vector<8x128xf32>
    %c0_8 = arith.constant 0 : index
    %c0_9 = arith.constant 0 : index
    %16 = vector.load %arg4[%c0_8, %c0_9] : memref<128x16xf32, #tpu.memory_space<vmem>>, vector<128x16xf32>
    %cst_10 = arith.constant dense<0.000000e+00> : vector<8x16xf32>
    %17 = tpu.matmul %15, %16, %cst_10 {dimension_numbers = #tpu.dot_dimension_numbers<[1], [0], [0], [1], [0, 0, 1, 1], [], []>} : vector<8x128xf32>, vector<128x16xf32>, vector<8x16xf32> -> vector<8x16xf32>
    %c0_11 = arith.constant 0 : index
    %c0_12 = arith.constant 0 : index
    %18 = vector.load %arg5[%c0_11, %c0_12] : memref<1x16xf32, #tpu.memory_space<vmem>>, vector<1x16xf32>
    %19 = vector.broadcast %18 : vector<1x16xf32> to vector<8x16xf32>
    %20 = arith.addf %17, %19 : vector<8x16xf32>
    %c0_13 = arith.constant 0 : index
    %c0_14 = arith.constant 0 : index
    %21 = vector.load %arg6[%c0_13, %c0_14] : memref<8x16xf32, #tpu.memory_space<vmem>>, vector<8x16xf32>
    tpu.vector_store %arg6[%c0_13, %c0_14], %20 {strides = array<i32>} : memref<8x16xf32, #tpu.memory_space<vmem>>, vector<8x16xf32>,
    return
  }
  func.func @transform_0(%arg0: i32) -> (i32, i32) {
    %c0_i32 = arith.constant 0 : i32
    %c0_i32_0 = arith.constant 0 : i32
    return %arg0, %c0_i32 : i32, i32
  }
  func.func @transform_1(%arg0: i32) -> (i32, i32) {
    %c0_i32 = arith.constant 0 : i32
    %c0_i32_0 = arith.constant 0 : i32
    %c0_i32_1 = arith.constant 0 : i32
    return %c0_i32, %c0_i32_0 : i32, i32
  }
  func.func @transform_2(%arg0: i32) -> (i32, i32) {
    %c0_i32 = arith.constant 0 : i32
    %c0_i32_0 = arith.constant 0 : i32
    %c0_i32_1 = arith.constant 0 : i32
    return %c0_i32, %c0_i32_0 : i32, i32
  }
  func.func @transform_3(%arg0: i32) -> (i32, i32) {
    %c0_i32 = arith.constant 0 : i32
    %c0_i32_0 = arith.constant 0 : i32
    %c0_i32_1 = arith.constant 0 : i32
    return %c0_i32, %c0_i32_0 : i32, i32
  }
  func.func @transform_4(%arg0: i32) -> (i32, i32) {
    %c0_i32 = arith.constant 0 : i32
    %c0_i32_0 = arith.constant 0 : i32
    %c0_i32_1 = arith.constant 0 : i32
    return %c0_i32, %c0_i32_0 : i32, i32
  }
  func.func @transform_5(%arg0: i32) -> (i32, i32) {
    %c0_i32 = arith.constant 0 : i32
    %c0_i32_0 = arith.constant 0 : i32
    return %arg0, %c0_i32 : i32, i32
  }
}

</mosaic_0001>

<llo_original>
// kernel: tpu_custom_call.1
$region0: #{tpu_custom_call.1}
  #allocation0 [shape = 'u32[]', space=smem, size = 0x4, offset = 0x4, fixed_abs, tag = 'smem constant byte address 0x4 - core index']
  #allocation1 [shape = 'u32[144,128]{1,0:T(1,128)}', space=vmem, size = 0x12000, scoped, tag = 'internal scratch']
  %s0 = inlined_call_operand.vmem [shape: f32[8,32], index: 0, kind: input, shape index: {}]
  %s1 = inlined_call_operand.vmem [shape: f32[32,128], index: 1, kind: input, shape index: {}]
  %s2 = inlined_call_operand.vmem [shape: f32[1,128], index: 2, kind: input, shape index: {}]
  %s3 = inlined_call_operand.vmem [shape: f32[128,16], index: 3, kind: input, shape index: {}]
  %s4 = inlined_call_operand.vmem [shape: f32[1,16], index: 4, kind: input, shape index: {}]
  %s5 = inlined_call_operand.hbm [shape: f32[8,16], index: 5, kind: output, shape index: {}]
  %s6 = sld [smem:[#allocation0]]
  $region30: #{tpu_custom_call.1} parent=0
    _
  %s8 = ssub.s32 1, %s6
  %s9 = scalar_select 0, %s8, %s6
  $region1: #{tpu_custom_call.1} parent=0
    #allocation2 [shape = 'u8[4096]{0}', space=vmem, size = 0x1000, scoped, tag = 'output window, operand 0, single buffered']
    #allocation3 [shape = 's32[1]{0}', space=sflag, size = 0x4, scoped, tag = 'scoped memory for tpu_custom_call.1']
    %10 = vsyncpa [#allocation3], 0
    // Predicated region
    $region2: #{tpu_custom_call.1} parent=1 // pred_check
      _
    $region3: #{tpu_custom_call.1} parent=1 // pred_check_branch
      %12 = sbr.rel (0) target = $region5
    $region4: #{tpu_custom_call.1} parent=1 // pred_region
      _
    $region5: #{tpu_custom_call.1} parent=1 // pred_fallthru
      _
    // Predicated region
    $region6: #{tpu_custom_call.1} parent=1 // pred_check
      _
    $region7: #{tpu_custom_call.1} parent=1 // pred_check_branch
      %14 = sbr.rel (0) target = $region9
    $region8: #{tpu_custom_call.1} parent=1 // pred_region
      _
    $region9: #{tpu_custom_call.1} parent=1 // pred_fallthru
      _
    // Predicated region
    $region10: #{tpu_custom_call.1} parent=1 // pred_check
      _
    $region11: #{tpu_custom_call.1} parent=1 // pred_check_branch
      %16 = sbr.rel (0) target = $region13
    $region12: #{tpu_custom_call.1} parent=1 // pred_region
      _
    $region13: #{tpu_custom_call.1} parent=1 // pred_fallthru
      _
    // Predicated region
    $region14: #{tpu_custom_call.1} parent=1 // pred_check
      _
    $region15: #{tpu_custom_call.1} parent=1 // pred_check_branch
      %18 = sbr.rel (0) target = $region17
    $region16: #{tpu_custom_call.1} parent=1 // pred_region
      _
    $region17: #{tpu_custom_call.1} parent=1 // pred_fallthru
      _
    // Predicated region
    $region18: #{tpu_custom_call.1} parent=1 // pred_check
      _
    $region19: #{tpu_custom_call.1} parent=1 // pred_check_branch
      %20 = sbr.rel (0) target = $region21
    $region20: #{tpu_custom_call.1} parent=1 // pred_region
      _
    $region21: #{tpu_custom_call.1} parent=1 // pred_fallthru
      _
    %v21 = vld [vmem:[%s0] sm:$0xff]
    %v22 = vmul.f32 %v21, %v21
    %vm23 = vcmask 261120
    %v24 = vsel %vm23, %v22, 0.0
    %25 = vadd.xlane.f32.xlu0 %v24
    %v26 = vpop.xlane.xlu0 %25
    %v27 = vadd.f32 %v26, 1.0
    %v28 = vmul.f32 %v27, 0.03125
    %v29 = vld [vmem:[%s1] sm:$0xff]
    %v30 = vld [vmem:[%s1 + $0x8] sm:$0xff]
    %v31 = vld [vmem:[%s1 + $0x10] sm:$0xff]
    %v32 = vld [vmem:[%s1 + $0x18] sm:$0xff]
    %v33 = vld [vmem:[%s2] sm:$0x1]
    %v35 = vlaneseq
    %v36 = vshrl.u32 %v35, 7
    %v37 = vsub.s32 0, %v36
    %v38 = vrot.slane %v33, %v37
    %v41 = vsel %vm23, %v21, 0
    %43 = vmatprep.subr.mxu0 0.0
    %44 = vmatpush1.msra.mxu0 0.0
    %45 = vmatprep.subr.mxu0 0.0
    %46 = vmatpush1.msra.mxu0 0.0
    %47 = vmatprep.subr.mxu0 0.0
    %48 = vmatpush1.msra.mxu0 0.0
    %49 = vmatprep.subr.mxu0 0.0
    %50 = vmatpush1.msra.mxu0 0.0
    %51 = vmatprep.subr.mxu0 0.0
    %52 = vmatpush1.msra.mxu0 0.0
    %53 = vmatprep.subr.mxu0 0.0
    %54 = vmatpush1.msra.mxu0 0.0
    %55 = vmatprep.subr.mxu0 0.0
    %56 = vmatpush1.msra.mxu0 0.0
    %57 = vmatprep.subr.mxu0 0.0
    %58 = vmatpush1.msra.mxu0 0.0
    %59 = vmatprep.subr.mxu0 0.0
    %60 = vmatpush1.msra.mxu0 0.0
    %61 = vmatprep.subr.mxu0 0.0
    %62 = vmatpush1.msra.mxu0 0.0
    %63 = vmatprep.subr.mxu0 0.0
    %64 = vmatpush1.msra.mxu0 0.0
    %65 = vmatprep.subr.mxu0 0.0
    %66 = vmatpush1.msra.mxu0 0.0
    %67 = vmatprep.subr.mxu0 0.0
    %68 = vmatpush1.msra.mxu0 %v32
    %69 = vmatprep.subr.mxu0 0.0
    %70 = vmatpush1.msra.mxu0 %v31
    %71 = vmatprep.subr.mxu0 0.0
    %72 = vmatpush1.msra.mxu0 %v30
    %73 = vmatprep.subr.mxu0 0.0
    %74 = vmatpush1.msra.mxu0 %v29
    %75 = vmatprep.subr.mxu0 0.0
    %76 = vmatpush2.msra.mxu0 0.0
    %77 = vmatprep.subr.mxu0 0.0
    %78 = vmatpush2.msra.mxu0 0.0
    %79 = vmatprep.subr.mxu0 0.0
    %80 = vmatpush2.msra.mxu0 0.0
    %81 = vmatprep.subr.mxu0 0.0
    %82 = vmatpush2.msra.mxu0 0.0
    %83 = vmatprep.subr.mxu0 0.0
    %84 = vmatpush2.msra.mxu0 0.0
    %85 = vmatprep.subr.mxu0 0.0
    %86 = vmatpush2.msra.mxu0 0.0
    %87 = vmatprep.subr.mxu0 0.0
    %88 = vmatpush2.msra.mxu0 0.0
    %89 = vmatprep.subr.mxu0 0.0
    %90 = vmatpush2.msra.mxu0 0.0
    %91 = vmatprep.subr.mxu0 0.0
    %92 = vmatpush2.msra.mxu0 0.0
    %93 = vmatprep.subr.mxu0 0.0
    %94 = vmatpush2.msra.mxu0 0.0
    %95 = vmatprep.subr.mxu0 0.0
    %96 = vmatpush2.msra.mxu0 0.0
    %97 = vmatprep.subr.mxu0 0.0
    %98 = vmatpush2.msra.mxu0 0.0
    %99 = vmatprep.subr.mxu0 0.0
    %100 = vmatpush2.msra.mxu0 0.0
    %101 = vmatprep.subr.mxu0 0.0
    %102 = vmatpush2.msra.mxu0 0.0
    %103 = vmatprep.subr.mxu0 0.0
    %104 = vmatpush2.msra.mxu0 0.0
    %105 = vmatprep.subr.mxu0 0.0
    %106 = vmatpush2.msra.mxu0 0.0
    %107 = vmatprep.mubr.f32.mxu0 0.0
    %108 = vmatmul.mubr.f32.gmra.mxu0 %v41
    %v109 = vpop.f32.mrf.mxu0
    %v110 = vadd.f32 %v38, %v109
    %v111 = vpop.f32.mrf.mxu0
    %112 = vdwg.mxu0
    %v113 = vsub.f32 %v110, %v28
    %v114 = vmul.f32 %v113, 1.442695
    %v115 = vpow.pop %v114
    %v116 = vld [vmem:[%s3] sm:$0xff]
    %v117 = vld [vmem:[%s3 + $0x8] sm:$0xff]
    %v118 = vld [vmem:[%s3 + $0x10] sm:$0xff]
    %v119 = vld [vmem:[%s3 + $0x18] sm:$0xff]
    %v120 = vld [vmem:[%s3 + $0x20] sm:$0xff]
    %v121 = vld [vmem:[%s3 + $0x28] sm:$0xff]
    %v122 = vld [vmem:[%s3 + $0x30] sm:$0xff]
    %v123 = vld [vmem:[%s3 + $0x38] sm:$0xff]
    %v124 = vld [vmem:[%s3 + $0x40] sm:$0xff]
    %v125 = vld [vmem:[%s3 + $0x48] sm:$0xff]
    %v126 = vld [vmem:[%s3 + $0x50] sm:$0xff]
    %v127 = vld [vmem:[%s3 + $0x58] sm:$0xff]
    %v128 = vld [vmem:[%s3 + $0x60] sm:$0xff]
    %v129 = vld [vmem:[%s3 + $0x68] sm:$0xff]
    %v130 = vld [vmem:[%s3 + $0x70] sm:$0xff]
    %v131 = vld [vmem:[%s3 + $0x78] sm:$0xff]
    %v132 = vld [vmem:[%s4] sm:$0x1]
    %v134 = vlaneseq
    %v135 = vshrl.u32 %v134, 7
    %v136 = vsub.s32 0, %v135
    %v137 = vrot.slane %v132, %v136
    %139 = vmatprep.subr.mxu0 0.0
    %140 = vmatpush1.msra.mxu0 %v131
    %141 = vmatprep.subr.mxu0 0.0
    %142 = vmatpush1.msra.mxu0 %v130
    %143 = vmatprep.subr.mxu0 0.0
    %144 = vmatpush1.msra.mxu0 %v129
    %145 = vmatprep.subr.mxu0 0.0
    %146 = vmatpush1.msra.mxu0 %v128
    %147 = vmatprep.subr.mxu0 0.0
    %148 = vmatpush1.msra.mxu0 %v127
    %149 = vmatprep.subr.mxu0 0.0
    %150 = vmatpush1.msra.mxu0 %v126
    %151 = vmatprep.subr.mxu0 0.0
    %152 = vmatpush1.msra.mxu0 %v125
    %153 = vmatprep.subr.mxu0 0.0
    %154 = vmatpush1.msra.mxu0 %v124
    %155 = vmatprep.subr.mxu0 0.0
    %156 = vmatpush1.msra.mxu0 %v123
    %157 = vmatprep.subr.mxu0 0.0
    %158 = vmatpush1.msra.mxu0 %v122
    %159 = vmatprep.subr.mxu0 0.0
    %160 = vmatpush1.msra.mxu0 %v121
    %161 = vmatprep.subr.mxu0 0.0
    %162 = vmatpush1.msra.mxu0 %v120
    %163 = vmatprep.subr.mxu0 0.0
    %164 = vmatpush1.msra.mxu0 %v119
    %165 = vmatprep.subr.mxu0 0.0
    %166 = vmatpush1.msra.mxu0 %v118
    %167 = vmatprep.subr.mxu0 0.0
    %168 = vmatpush1.msra.mxu0 %v117
    %169 = vmatprep.subr.mxu0 0.0
    %170 = vmatpush1.msra.mxu0 %v116
    %171 = vmatprep.subr.mxu0 0.0
    %172 = vmatpush2.msra.mxu0 0.0
    %173 = vmatprep.subr.mxu0 0.0
    %174 = vmatpush2.msra.mxu0 0.0
    %175 = vmatprep.subr.mxu0 0.0
    %176 = vmatpush2.msra.mxu0 0.0
    %177 = vmatprep.subr.mxu0 0.0
    %178 = vmatpush2.msra.mxu0 0.0
    %179 = vmatprep.subr.mxu0 0.0
    %180 = vmatpush2.msra.mxu0 0.0
    %181 = vmatprep.subr.mxu0 0.0
    %182 = vmatpush2.msra.mxu0 0.0
    %183 = vmatprep.subr.mxu0 0.0
    %184 = vmatpush2.msra.mxu0 0.0
    %185 = vmatprep.subr.mxu0 0.0
    %186 = vmatpush2.msra.mxu0 0.0
    %187 = vmatprep.subr.mxu0 0.0
    %188 = vmatpush2.msra.mxu0 0.0
    %189 = vmatprep.subr.mxu0 0.0
    %190 = vmatpush2.msra.mxu0 0.0
    %191 = vmatprep.subr.mxu0 0.0
    %192 = vmatpush2.msra.mxu0 0.0
    %193 = vmatprep.subr.mxu0 0.0
    %194 = vmatpush2.msra.mxu0 0.0
    %195 = vmatprep.subr.mxu0 0.0
    %196 = vmatpush2.msra.mxu0 0.0
    %197 = vmatprep.subr.mxu0 0.0
    %198 = vmatpush2.msra.mxu0 0.0
    %199 = vmatprep.subr.mxu0 0.0
    %200 = vmatpush2.msra.mxu0 0.0
    %201 = vmatprep.subr.mxu0 0.0
    %202 = vmatpush2.msra.mxu0 0.0
    %203 = vmatprep.mubr.f32.mxu0 0.0
    %204 = vmatmul.mubr.f32.gmra.mxu0 %v115
    %v205 = vpop.f32.mrf.mxu0
    %v206 = vadd.f32 %v137, %v205
    %v207 = vpop.f32.mrf.mxu0
    %208 = vdwg.mxu0
    %vm209 = vcmask 130048
    %210 = vst.msk [vmem:[#allocation2] sm:$0xff] %vm209, %v206
    // Predicated region
    $region22: #{tpu_custom_call.1} parent=1 // pred_check
      _
    $region23: #{tpu_custom_call.1} parent=1 // pred_check_branch
      %212 = sbr.rel (0) target = $region25
    $region24: #{tpu_custom_call.1} parent=1 // pred_region
      %s214 = ssub.s32 128, 128
      %215 = vsyncadd [#allocation3], %s214
      %s217 = sshll.u32 [#allocation2], 4
      %s218 = int_to_ptr.vmem [resolvable:$true] %s217
      %220 = dma.vmem_to_hbm [thread:$0]  %s218, 128, %s5, [#allocation3]
    $region25: #{tpu_custom_call.1} parent=1 // pred_fallthru
      _
    // Predicated region
    $region26: #{tpu_custom_call.1} parent=1 // pred_check
      _
    $region27: #{tpu_custom_call.1} parent=1 // pred_check_branch
      %222 = sbr.rel (0) target = $region29
    $region28: #{tpu_custom_call.1} parent=1 // pred_region
      %223 = dma.done [#allocation3], 128
    $region29: #{tpu_custom_call.1} parent=1 // pred_fallthru
      _
    %224 = vsyncpa [#allocation3], 1

</llo_original>
